<compile_context>
chip_gen: v5e
topology: v5e:2x2
jax: 0.10.0
libtpu: 0.0.40
codegen_flags: <defaults>
</compile_context>

<pallas_src>
import jax
import jax.numpy as jnp
from jax.experimental import pallas as pl
from jax.experimental.pallas import tpu as pltpu


def _round_up(x, m):
    return ((x + m - 1) // m) * m


def decoder_kernel(x_ref, w1_ref, b1_ref, w2_ref, b2_ref, w3_ref, b3_ref, out_ref):
    """Fused MLP decoder tile: (Linear+foldedBN -> ReLU) x2 -> Linear (lane-padded)."""
    # Layer 1: Linear with folded BN affine, then ReLU (dropout = identity in eval).
    x = x_ref[...].astype(jnp.bfloat16)
    h = jnp.dot(x, w1_ref[...], preferred_element_type=jnp.float32)
    h = jnp.maximum(h + b1_ref[...], 0.0)

    # Layer 2: Linear with folded BN affine, then ReLU.
    h = jnp.dot(h.astype(jnp.bfloat16), w2_ref[...], preferred_element_type=jnp.float32)
    h = jnp.maximum(h + b2_ref[...], 0.0)

    # Output projection (columns padded to a multiple of 128 -> unmasked lane-dense stores).
    out = jnp.dot(h.astype(jnp.bfloat16), w3_ref[...], preferred_element_type=jnp.float32)
    out_ref[...] = (out + b3_ref[...]).astype(out_ref.dtype)


def decoder_forward(x, params, n_features, num_classes):
    """Run the batch-tiled fused Pallas decoder and reshape to (B, n_features, num_classes)."""
    B, latent_dim = x.shape
    out_dim = n_features * num_classes

    h1 = params["w1"].shape[1]
    h2 = params["w2"].shape[1]
    out_dim_pad = params["w3"].shape[1]          # already padded to a multiple of 128

    # Batch tile: 256 rows (fills MXU M-dim, multiple of 8 sublanes); for small batches
    # just round up to a multiple of 8 so a single tile covers everything.
    TB = 256 if B >= 256 else max(8, _round_up(B, 8))
    B_pad = _round_up(B, TB)
    if B_pad != B:
        x = jnp.pad(x, ((0, B_pad - B), (0, 0)))

    grid = (B_pad // TB,)

    # Advisory cost for XLA's scheduler: 3 matmuls over the padded problem.
    flops = 2 * B_pad * (latent_dim * h1 + h1 * h2 + h2 * out_dim_pad)
    bytes_accessed = (
        x.size * 4
        + (params["w1"].size + params["w2"].size + params["w3"].size) * 2   # bf16 weights
        + (params["b1"].size + params["b2"].size + params["b3"].size) * 4   # f32 biases
        + B_pad * out_dim_pad * 4                                           # f32 output
    )
    cost = pl.CostEstimate(flops=flops, transcendentals=0, bytes_accessed=bytes_accessed)

    flat = pl.pallas_call(
        decoder_kernel,
        out_shape=jax.ShapeDtypeStruct((B_pad, out_dim_pad), jnp.float32),
        grid=grid,
        in_specs=[
            pl.BlockSpec((TB, latent_dim), lambda i: (i, 0)),      # x tile
            pl.BlockSpec((latent_dim, h1), lambda i: (0, 0)),      # w1 (pinned)
            pl.BlockSpec((1, h1), lambda i: (0, 0)),               # b1 (pinned)
            pl.BlockSpec((h1, h2), lambda i: (0, 0)),              # w2 (pinned)
            pl.BlockSpec((1, h2), lambda i: (0, 0)),               # b2 (pinned)
            pl.BlockSpec((h2, out_dim_pad), lambda i: (0, 0)),     # w3 (pinned, lane-padded)
            pl.BlockSpec((1, out_dim_pad), lambda i: (0, 0)),      # b3 (pinned, lane-padded)
        ],
        out_specs=pl.BlockSpec((TB, out_dim_pad), lambda i: (i, 0)),
        compiler_params=pltpu.CompilerParams(
            dimension_semantics=("parallel",),
        ),
        cost_estimate=cost,
    )(x, params["w1"], params["b1"], params["w2"], params["b2"],
      params["w3"], params["b3"])

    # Strip batch padding and lane padding, then reshape (pure JAX glue).
    return flat[:B, :out_dim].reshape(B, n_features, num_classes)


def init_decoder_params(key, latent_dim, hidden_layer_sizes, n_features, num_classes):
    """Synthetic init mirroring nn.Linear / nn.BatchNorm1d (eval), with BN folded into
    the Linear weights, bf16 weights for the MXU, and lane-padded output projection."""
    h1, h2 = hidden_layer_sizes
    out_dim = n_features * num_classes
    out_dim_pad = _round_up(out_dim, 128)
    eps = 1e-5

    k1, k2, k3, k4, k5, k6 = jax.random.split(key, 6)

    def lin_init(kw, kb, fan_in, fan_out):
        bound = 1.0 / jnp.sqrt(fan_in)
        w = jax.random.uniform(kw, (fan_in, fan_out), jnp.float32, -bound, bound)
        b = jax.random.uniform(kb, (1, fan_out), jnp.float32, -bound, bound)
        return w, b

    w1, b1 = lin_init(k1, k2, latent_dim, h1)
    w2, b2 = lin_init(k3, k4, h1, h2)
    w3, b3 = lin_init(k5, k6, h2, out_dim)

    # BatchNorm1d (eval) defaults: gamma=1, beta=0, running_mean=0, running_var=1.
    def bn_fold(size):
        gamma = jnp.ones((1, size), jnp.float32)
        beta = jnp.zeros((1, size), jnp.float32)
        running_mean = jnp.zeros((1, size), jnp.float32)
        running_var = jnp.ones((1, size), jnp.float32)
        scale = gamma / jnp.sqrt(running_var + eps)
        shift = beta - running_mean * scale
        return scale, shift

    s1, t1 = bn_fold(h1)
    s2, t2 = bn_fold(h2)

    # Fold BN into the Linear: y = (x W + b) * s + t = x (W * s) + (b * s + t).
    w1f = w1 * s1
    b1f = b1 * s1 + t1
    w2f = w2 * s2
    b2f = b2 * s2 + t2

    # Lane-pad the output projection with zero columns so stores are full-lane.
    w3p = jnp.zeros((h2, out_dim_pad), jnp.float32).at[:, :out_dim].set(w3)
    b3p = jnp.zeros((1, out_dim_pad), jnp.float32).at[:, :out_dim].set(b3)

    return {
        "w1": w1f.astype(jnp.bfloat16), "b1": b1f,
        "w2": w2f.astype(jnp.bfloat16), "b2": b2f,
        "w3": w3p.astype(jnp.bfloat16), "b3": b3p,
    }


if __name__ == "__main__":
    # Small shapes consistent with the module defaults.
    batch = 4
    latent_dim = 2
    hidden_layer_sizes = [128, 64]
    n_features = 16
    num_classes = 3

    key = jax.random.PRNGKey(0)
    kx, kp = jax.random.split(key)

    x = jax.random.normal(kx, (batch, latent_dim), jnp.float32)
    params = init_decoder_params(kp, latent_dim, hidden_layer_sizes,
                                 n_features, num_classes)

    out = decoder_forward(x, params, n_features, num_classes)
    out = jax.block_until_ready(out)

    assert out.shape == (batch, n_features, num_classes), out.shape
    assert out.dtype == jnp.float32
    assert bool(jnp.all(jnp.isfinite(out)))

    print("KERNEL_OK")
</pallas_src>

<mosaic_0001>
module attributes {stable_mosaic.version = 11 : i64} {
  func.func @decoder_kernel(%arg0: i32, %arg1: memref<8x2xf32, #tpu.memory_space<vmem>>, %arg2: memref<2x128xbf16, #tpu.memory_space<vmem>>, %arg3: memref<1x128xf32, #tpu.memory_space<vmem>>, %arg4: memref<128x64xbf16, #tpu.memory_space<vmem>>, %arg5: memref<1x64xf32, #tpu.memory_space<vmem>>, %arg6: memref<64x128xbf16, #tpu.memory_space<vmem>>, %arg7: memref<1x128xf32, #tpu.memory_space<vmem>>, %arg8: memref<8x128xf32, #tpu.memory_space<vmem>>) attributes {dimension_semantics = [#tpu.dimension_semantics<parallel>], iteration_bounds = array<i64: 1>, scalar_prefetch = 0 : i64, scratch_operands = 0 : i64, tpu.core_type = #tpu.core_type<tc>, window_params = [{transform_indices = @transform_0, window_bounds = array<i64: 8, 2>}, {pipeline_mode = #tpu.pipeline_mode<synchronous>, transform_indices = @transform_1, window_bounds = array<i64: 2, 128>}, {pipeline_mode = #tpu.pipeline_mode<synchronous>, transform_indices = @transform_2, window_bounds = array<i64: 1, 128>}, {pipeline_mode = #tpu.pipeline_mode<synchronous>, transform_indices = @transform_3, window_bounds = array<i64: 128, 64>}, {pipeline_mode = #tpu.pipeline_mode<synchronous>, transform_indices = @transform_4, window_bounds = array<i64: 1, 64>}, {pipeline_mode = #tpu.pipeline_mode<synchronous>, transform_indices = @transform_5, window_bounds = array<i64: 64, 128>}, {pipeline_mode = #tpu.pipeline_mode<synchronous>, transform_indices = @transform_6, window_bounds = array<i64: 1, 128>}, {transform_indices = @transform_7, window_bounds = array<i64: 8, 128>}]} {
    %c0 = arith.constant 0 : index
    %c0_0 = arith.constant 0 : index
    %0 = vector.load %arg1[%c0, %c0_0] : memref<8x2xf32, #tpu.memory_space<vmem>>, vector<8x2xf32>
    %1 = arith.truncf %0 : vector<8x2xf32> to vector<8x2xbf16>
    %c0_1 = arith.constant 0 : index
    %c0_2 = arith.constant 0 : index
    %2 = vector.load %arg2[%c0_1, %c0_2] : memref<2x128xbf16, #tpu.memory_space<vmem>>, vector<2x128xbf16>
    %cst = arith.constant dense<0.000000e+00> : vector<8x128xf32>
    %3 = tpu.matmul %1, %2, %cst {dimension_numbers = #tpu.dot_dimension_numbers<[1], [0], [0], [1], [0, 0, 1, 1], [], []>} : vector<8x2xbf16>, vector<2x128xbf16>, vector<8x128xf32> -> vector<8x128xf32>
    %c0_3 = arith.constant 0 : index
    %c0_4 = arith.constant 0 : index
    %4 = vector.load %arg3[%c0_3, %c0_4] : memref<1x128xf32, #tpu.memory_space<vmem>>, vector<1x128xf32>
    %5 = vector.broadcast %4 : vector<1x128xf32> to vector<8x128xf32>
    %6 = arith.addf %3, %5 : vector<8x128xf32>
    %cst_5 = arith.constant 0.000000e+00 : f32
    %7 = vector.broadcast %cst_5 : f32 to vector<8x128xf32>
    %8 = arith.maximumf %6, %7 : vector<8x128xf32>
    %9 = arith.truncf %8 : vector<8x128xf32> to vector<8x128xbf16>
    %c0_6 = arith.constant 0 : index
    %c0_7 = arith.constant 0 : index
    %10 = vector.load %arg4[%c0_6, %c0_7] : memref<128x64xbf16, #tpu.memory_space<vmem>>, vector<128x64xbf16>
    %cst_8 = arith.constant dense<0.000000e+00> : vector<8x64xf32>
    %11 = tpu.matmul %9, %10, %cst_8 {dimension_numbers = #tpu.dot_dimension_numbers<[1], [0], [0], [1], [0, 0, 1, 1], [], []>} : vector<8x128xbf16>, vector<128x64xbf16>, vector<8x64xf32> -> vector<8x64xf32>
    %c0_9 = arith.constant 0 : index
    %c0_10 = arith.constant 0 : index
    %12 = vector.load %arg5[%c0_9, %c0_10] : memref<1x64xf32, #tpu.memory_space<vmem>>, vector<1x64xf32>
    %13 = vector.broadcast %12 : vector<1x64xf32> to vector<8x64xf32>
    %14 = arith.addf %11, %13 : vector<8x64xf32>
    %cst_11 = arith.constant 0.000000e+00 : f32
    %15 = vector.broadcast %cst_11 : f32 to vector<8x64xf32>
    %16 = arith.maximumf %14, %15 : vector<8x64xf32>
    %17 = arith.truncf %16 : vector<8x64xf32> to vector<8x64xbf16>
    %c0_12 = arith.constant 0 : index
    %c0_13 = arith.constant 0 : index
    %18 = vector.load %arg6[%c0_12, %c0_13] : memref<64x128xbf16, #tpu.memory_space<vmem>>, vector<64x128xbf16>
    %cst_14 = arith.constant dense<0.000000e+00> : vector<8x128xf32>
    %19 = tpu.matmul %17, %18, %cst_14 {dimension_numbers = #tpu.dot_dimension_numbers<[1], [0], [0], [1], [0, 0, 1, 1], [], []>} : vector<8x64xbf16>, vector<64x128xbf16>, vector<8x128xf32> -> vector<8x128xf32>
    %c0_15 = arith.constant 0 : index
    %c0_16 = arith.constant 0 : index
    %20 = vector.load %arg7[%c0_15, %c0_16] : memref<1x128xf32, #tpu.memory_space<vmem>>, vector<1x128xf32>
    %21 = vector.broadcast %20 : vector<1x128xf32> to vector<8x128xf32>
    %22 = arith.addf %19, %21 : vector<8x128xf32>
    %c0_17 = arith.constant 0 : index
    %c0_18 = arith.constant 0 : index
    %23 = vector.load %arg8[%c0_17, %c0_18] : memref<8x128xf32, #tpu.memory_space<vmem>>, vector<8x128xf32>
    tpu.vector_store %arg8[%c0_17, %c0_18], %22 {strides = array<i32>} : memref<8x128xf32, #tpu.memory_space<vmem>>, vector<8x128xf32>,
    return
  }
  func.func @transform_0(%arg0: i32) -> (i32, i32) {
    %c0_i32 = arith.constant 0 : i32
    %c0_i32_0 = arith.constant 0 : i32
    return %arg0, %c0_i32 : i32, i32
  }
  func.func @transform_1(%arg0: i32) -> (i32, i32) {
    %c0_i32 = arith.constant 0 : i32
    %c0_i32_0 = arith.constant 0 : i32
    %c0_i32_1 = arith.constant 0 : i32
    return %c0_i32, %c0_i32_0 : i32, i32
  }
  func.func @transform_2(%arg0: i32) -> (i32, i32) {
    %c0_i32 = arith.constant 0 : i32
    %c0_i32_0 = arith.constant 0 : i32
    %c0_i32_1 = arith.constant 0 : i32
    return %c0_i32, %c0_i32_0 : i32, i32
  }
  func.func @transform_3(%arg0: i32) -> (i32, i32) {
    %c0_i32 = arith.constant 0 : i32
    %c0_i32_0 = arith.constant 0 : i32
    %c0_i32_1 = arith.constant 0 : i32
    return %c0_i32, %c0_i32_0 : i32, i32
  }
  func.func @transform_4(%arg0: i32) -> (i32, i32) {
    %c0_i32 = arith.constant 0 : i32
    %c0_i32_0 = arith.constant 0 : i32
    %c0_i32_1 = arith.constant 0 : i32
    return %c0_i32, %c0_i32_0 : i32, i32
  }
  func.func @transform_5(%arg0: i32) -> (i32, i32) {
    %c0_i32 = arith.constant 0 : i32
    %c0_i32_0 = arith.constant 0 : i32
    %c0_i32_1 = arith.constant 0 : i32
    return %c0_i32, %c0_i32_0 : i32, i32
  }
  func.func @transform_6(%arg0: i32) -> (i32, i32) {
    %c0_i32 = arith.constant 0 : i32
    %c0_i32_0 = arith.constant 0 : i32
    %c0_i32_1 = arith.constant 0 : i32
    return %c0_i32, %c0_i32_0 : i32, i32
  }
  func.func @transform_7(%arg0: i32) -> (i32, i32) {
    %c0_i32 = arith.constant 0 : i32
    %c0_i32_0 = arith.constant 0 : i32
    return %arg0, %c0_i32 : i32, i32
  }
}

</mosaic_0001>

<llo_original>
// kernel: tpu_custom_call.1
$region0: #{tpu_custom_call.1}
  #allocation0 [shape = 'u32[]', space=smem, size = 0x4, offset = 0x4, fixed_abs, tag = 'smem constant byte address 0x4 - core index']
  #allocation1 [shape = 'u32[72,128]{1,0:T(1,128)}', space=vmem, size = 0x9000, scoped, tag = 'internal scratch']
  %s0 = inlined_call_operand.vmem [shape: f32[8,2], index: 0, kind: input, shape index: {}]
  %s1 = inlined_call_operand.vmem [shape: bf16[2,128], index: 1, kind: input, shape index: {}]
  %s2 = inlined_call_operand.vmem [shape: f32[1,128], index: 2, kind: input, shape index: {}]
  %s3 = inlined_call_operand.vmem [shape: bf16[128,64], index: 3, kind: input, shape index: {}]
  %s4 = inlined_call_operand.vmem [shape: f32[1,64], index: 4, kind: input, shape index: {}]
  %s5 = inlined_call_operand.vmem [shape: bf16[64,128], index: 5, kind: input, shape index: {}]
  %s6 = inlined_call_operand.vmem [shape: f32[1,128], index: 6, kind: input, shape index: {}]
  %s7 = inlined_call_operand.hbm [shape: f32[8,128], index: 7, kind: output, shape index: {}]
  %s8 = sld [smem:[#allocation0]]
  $region38: #{tpu_custom_call.1} parent=0
    _
  %s10 = ssub.s32 1, %s8
  %s11 = scalar_select 0, %s10, %s8
  $region1: #{tpu_custom_call.1} parent=0
    #allocation2 [shape = 'u8[4096]{0}', space=vmem, size = 0x1000, scoped, tag = 'output window, operand 0, single buffered']
    #allocation3 [shape = 's32[1]{0}', space=sflag, size = 0x4, scoped, tag = 'scoped memory for tpu_custom_call.1']
    %12 = vsyncpa [#allocation3], 0
    // Predicated region
    $region2: #{tpu_custom_call.1} parent=1 // pred_check
      _
    $region3: #{tpu_custom_call.1} parent=1 // pred_check_branch
      %14 = sbr.rel (0) target = $region5
    $region4: #{tpu_custom_call.1} parent=1 // pred_region
      _
    $region5: #{tpu_custom_call.1} parent=1 // pred_fallthru
      _
    // Predicated region
    $region6: #{tpu_custom_call.1} parent=1 // pred_check
      _
    $region7: #{tpu_custom_call.1} parent=1 // pred_check_branch
      %16 = sbr.rel (0) target = $region9
    $region8: #{tpu_custom_call.1} parent=1 // pred_region
      _
    $region9: #{tpu_custom_call.1} parent=1 // pred_fallthru
      _
    // Predicated region
    $region10: #{tpu_custom_call.1} parent=1 // pred_check
      _
    $region11: #{tpu_custom_call.1} parent=1 // pred_check_branch
      %18 = sbr.rel (0) target = $region13
    $region12: #{tpu_custom_call.1} parent=1 // pred_region
      _
    $region13: #{tpu_custom_call.1} parent=1 // pred_fallthru
      _
    // Predicated region
    $region14: #{tpu_custom_call.1} parent=1 // pred_check
      _
    $region15: #{tpu_custom_call.1} parent=1 // pred_check_branch
      %20 = sbr.rel (0) target = $region17
    $region16: #{tpu_custom_call.1} parent=1 // pred_region
      _
    $region17: #{tpu_custom_call.1} parent=1 // pred_fallthru
      _
    // Predicated region
    $region18: #{tpu_custom_call.1} parent=1 // pred_check
      _
    $region19: #{tpu_custom_call.1} parent=1 // pred_check_branch
      %22 = sbr.rel (0) target = $region21
    $region20: #{tpu_custom_call.1} parent=1 // pred_region
      _
    $region21: #{tpu_custom_call.1} parent=1 // pred_fallthru
      _
    // Predicated region
    $region22: #{tpu_custom_call.1} parent=1 // pred_check
      _
    $region23: #{tpu_custom_call.1} parent=1 // pred_check_branch
      %24 = sbr.rel (0) target = $region25
    $region24: #{tpu_custom_call.1} parent=1 // pred_region
      _
    $region25: #{tpu_custom_call.1} parent=1 // pred_fallthru
      _
    // Predicated region
    $region26: #{tpu_custom_call.1} parent=1 // pred_check
      _
    $region27: #{tpu_custom_call.1} parent=1 // pred_check_branch
      %26 = sbr.rel (0) target = $region29
    $region28: #{tpu_custom_call.1} parent=1 // pred_region
      _
    $region29: #{tpu_custom_call.1} parent=1 // pred_fallthru
      _
    %v28 = vld [vmem:[%s0] sm:$0xff]
    %v29 = vpack.c.bf16 %v28, %v28
    %v30 = vld [vmem:[%s1] sm:$0x1]
    %v31 = vld [vmem:[%s2] sm:$0x1]
    %v33 = vperm.slane %v31, 0
    %vm35 = vcmask 15360
    %v37 = vsel %vm35, %v29, 0
    %vm39 = vcmask 1040384
    %v41 = vsel %vm39, %v30, 0
    %43 = vmatpush.bf16.msra.mxu0 0
    %44 = vmatpush.bf16.msra.mxu0 0
    %45 = vmatpush.bf16.msra.mxu0 0
    %46 = vmatpush.bf16.msra.mxu0 0
    %47 = vmatpush.bf16.msra.mxu0 0
    %48 = vmatpush.bf16.msra.mxu0 0
    %49 = vmatpush.bf16.msra.mxu0 0
    %50 = vmatpush.bf16.msra.mxu0 %v41
    %51 = vmatmul.bf16.gmra.mxu0 %v37
    %v52 = vpop.f32.mrf.mxu0
    %v53 = vadd.f32 %v33, %v52
    %v54 = vpop.f32.mrf.mxu0
    %55 = vdwg.mxu0
    %v56 = vmax.f32 %v53, 0.0
    %v57 = vpack.c.bf16 %v56, %v56
    %v58 = vld [vmem:[%s3] sm:$0xf]
    %v59 = vld [vmem:[%s3 + $0x4] sm:$0xf]
    %v60 = vld [vmem:[%s3 + $0x8] sm:$0xf]
    %v61 = vld [vmem:[%s3 + $0xc] sm:$0xf]
    %v62 = vld [vmem:[%s3 + $0x10] sm:$0xf]
    %v63 = vld [vmem:[%s3 + $0x14] sm:$0xf]
    %v64 = vld [vmem:[%s3 + $0x18] sm:$0xf]
    %v65 = vld [vmem:[%s3 + $0x1c] sm:$0xf]
    %v66 = vld [vmem:[%s3 + $0x20] sm:$0xf]
    %v67 = vld [vmem:[%s3 + $0x24] sm:$0xf]
    %v68 = vld [vmem:[%s3 + $0x28] sm:$0xf]
    %v69 = vld [vmem:[%s3 + $0x2c] sm:$0xf]
    %v70 = vld [vmem:[%s3 + $0x30] sm:$0xf]
    %v71 = vld [vmem:[%s3 + $0x34] sm:$0xf]
    %v72 = vld [vmem:[%s3 + $0x38] sm:$0xf]
    %v73 = vld [vmem:[%s3 + $0x3c] sm:$0xf]
    %v74 = vld [vmem:[%s4] sm:$0x1]
    %v76 = vperm.slane %v74, 0
    %v94 = vunpack.c.l.b16 %v58
    %v95 = vunpack.c.l.b16 %v59
    %v96 = vunpack.c.l.b16 %v60
    %v97 = vunpack.c.l.b16 %v61
    %v98 = vunpack.c.l.b16 %v62
    %v99 = vunpack.c.l.b16 %v63
    %v100 = vunpack.c.l.b16 %v64
    %v101 = vunpack.c.l.b16 %v65
    %v102 = vunpack.c.l.b16 %v66
    %v103 = vunpack.c.l.b16 %v67
    %v104 = vunpack.c.l.b16 %v68
    %v105 = vunpack.c.l.b16 %v69
    %v106 = vunpack.c.l.b16 %v70
    %v107 = vunpack.c.l.b16 %v71
    %v108 = vunpack.c.l.b16 %v72
    %v109 = vunpack.c.l.b16 %v73
    %v110 = vpack.c.b16 %v95, %v94
    %v111 = vpack.c.b16 %v97, %v96
    %v112 = vpack.c.b16 %v99, %v98
    %v113 = vpack.c.b16 %v101, %v100
    %v114 = vpack.c.b16 %v103, %v102
    %v115 = vpack.c.b16 %v105, %v104
    %v116 = vpack.c.b16 %v107, %v106
    %v117 = vpack.c.b16 %v109, %v108
    %126 = vmatpush.bf16.msra.mxu0 %v117
    %127 = vmatpush.bf16.msra.mxu0 %v116
    %128 = vmatpush.bf16.msra.mxu0 %v115
    %129 = vmatpush.bf16.msra.mxu0 %v114
    %130 = vmatpush.bf16.msra.mxu0 %v113
    %131 = vmatpush.bf16.msra.mxu0 %v112
    %132 = vmatpush.bf16.msra.mxu0 %v111
    %133 = vmatpush.bf16.msra.mxu0 %v110
    %134 = vmatmul.bf16.gmra.mxu0 %v57
    %v135 = vpop.f32.mrf.mxu0
    %v136 = vadd.f32 %v76, %v135
    %v137 = vpop.f32.mrf.mxu0
    %138 = vdwg.mxu0
    %v139 = vmax.f32 %v136, 0.0
    %v140 = vpack.c.bf16 %v139, %v139
    %v141 = vld [vmem:[%s5] sm:$0xf]
    %v142 = vld [vmem:[%s5 + $0x4] sm:$0xf]
    %v143 = vld [vmem:[%s5 + $0x8] sm:$0xf]
    %v144 = vld [vmem:[%s5 + $0xc] sm:$0xf]
    %v145 = vld [vmem:[%s5 + $0x10] sm:$0xf]
    %v146 = vld [vmem:[%s5 + $0x14] sm:$0xf]
    %v147 = vld [vmem:[%s5 + $0x18] sm:$0xf]
    %v148 = vld [vmem:[%s5 + $0x1c] sm:$0xf]
    %v149 = vld [vmem:[%s6] sm:$0x1]
    %v151 = vperm.slane %v149, 0
    %v161 = vunpack.c.l.b16 %v141
    %v162 = vunpack.c.l.b16 %v142
    %v163 = vunpack.c.l.b16 %v143
    %v164 = vunpack.c.l.b16 %v144
    %v165 = vunpack.c.l.b16 %v145
    %v166 = vunpack.c.l.b16 %v146
    %v167 = vunpack.c.l.b16 %v147
    %v168 = vunpack.c.l.b16 %v148
    %v169 = vpack.c.b16 %v162, %v161
    %v170 = vpack.c.b16 %v164, %v163
    %v171 = vpack.c.b16 %v166, %v165
    %v172 = vpack.c.b16 %v168, %v167
    %vm177 = vcmask 523264
    %v179 = vsel %vm177, %v140, 0
    %181 = vmatpush.bf16.msra.mxu0 0
    %182 = vmatpush.bf16.msra.mxu0 0
    %183 = vmatpush.bf16.msra.mxu0 0
    %184 = vmatpush.bf16.msra.mxu0 0
    %185 = vmatpush.bf16.msra.mxu0 %v172
    %186 = vmatpush.bf16.msra.mxu0 %v171
    %187 = vmatpush.bf16.msra.mxu0 %v170
    %188 = vmatpush.bf16.msra.mxu0 %v169
    %189 = vmatmul.bf16.gmra.mxu0 %v179
    %v190 = vpop.f32.mrf.mxu0
    %v191 = vadd.f32 %v151, %v190
    %v192 = vpop.f32.mrf.mxu0
    %193 = vdwg.mxu0
    %194 = vst [vmem:[#allocation2] sm:$0xff] %v191
    // Predicated region
    $region30: #{tpu_custom_call.1} parent=1 // pred_check
      _
    $region31: #{tpu_custom_call.1} parent=1 // pred_check_branch
      %196 = sbr.rel (0) target = $region33
    $region32: #{tpu_custom_call.1} parent=1 // pred_region
      %198 = vsyncadd [#allocation3], 0
      %s200 = sshll.u32 [#allocation2], 4
      %s201 = int_to_ptr.vmem [resolvable:$true] %s200
      %s202 = sshll.u32 %s7, 4
      %s203 = int_to_ptr.hbm [resolvable:$true] %s202
      %205 = dma.vmem_to_hbm [thread:$0]  %s201, 128, %s203, [#allocation3]
    $region33: #{tpu_custom_call.1} parent=1 // pred_fallthru
      _
    // Predicated region
    $region34: #{tpu_custom_call.1} parent=1 // pred_check
      _
    $region35: #{tpu_custom_call.1} parent=1 // pred_check_branch
      %207 = sbr.rel (0) target = $region37
    $region36: #{tpu_custom_call.1} parent=1 // pred_region
      %209 = dma.done [#allocation3], 128
    $region37: #{tpu_custom_call.1} parent=1 // pred_fallthru
      _
    %210 = vsyncpa [#allocation3], 1

</llo_original>
